<compile_context>
chip_gen: v7x
topology: tpu7x:2x2x1
jax: 0.10.0
libtpu: 0.0.40
codegen_flags: <defaults>
</compile_context>

<pallas_src>
import jax
import jax.numpy as jnp
from jax.experimental import pallas as pl
from jax.experimental.pallas import tpu as pltpu


def _mult_attn_kernel(q_ref, enc_ref, ctx_ref, attn_ref):
    # q_ref   : (BB, H)     pre-projected decoder queries (decoder_hidden @ Wa.T)
    # enc_ref : (BB, T, H)  encoder outputs
    # ctx_ref : (BB, H)     output context
    # attn_ref: (BB, T)     output attention weights
    q = q_ref[...][:, None, :]          # (BB, 1, H)
    enc = enc_ref[...]                  # (BB, T, H)

    # scores[b, 0, t] = sum_h q[b, 0, h] * enc[b, t, h]
    # Batched contraction over the (trailing) H axis: no transposed VMEM copy.
    scores = jnp.einsum(
        "bqh,bth->bqt", q, enc, preferred_element_type=jnp.float32
    )                                   # (BB, 1, T), f32

    # TODO(synk): optional `mask` argument of the PyTorch module not implemented
    # (forward is exercised with mask=None); with a mask, fill masked scores with
    # -inf here before the max/sum.

    # Numerically stable softmax over T; divide replaced by EUP reciprocal.
    m = jnp.max(scores, axis=2, keepdims=True)            # (BB, 1, 1)
    e = jnp.exp(scores - m)                                # (BB, 1, T)
    denom = jnp.sum(e, axis=2, keepdims=True)              # (BB, 1, 1)
    w = e * pl.reciprocal(denom, approx=True)              # (BB, 1, T)

    attn_ref[...] = w[:, 0, :].astype(attn_ref.dtype)

    # context[b, h] = sum_t w[b, t] * enc[b, t, h]
    ctx = jnp.einsum(
        "bqt,bth->bqh", w.astype(enc.dtype), enc, preferred_element_type=jnp.float32
    )                                   # (BB, 1, H)
    ctx_ref[...] = ctx[:, 0, :].astype(ctx_ref.dtype)


def _choose_block_batch(B, T, H, itemsize):
    """Batch rows per grid step.

    Multiple of 8 so output stores are sublane-dense, capped at 32, and small
    enough that the double-buffered (BB, T, H) encoder slab fits a VMEM budget
    that is safe on v7x's 64 MiB VMEM (and trivially safe on v5e/v6e's 128 MiB).
    """
    budget = 24 * 1024 * 1024                    # double-buffered encoder-slab budget
    per_row = 2 * T * H * itemsize               # double-buffered bytes per batch row
    bb = min(32, max(8, (budget // max(per_row, 1)) // 8 * 8))
    # Don't make the block bigger than the batch padded up to a multiple of 8.
    bb = min(bb, ((B + 7) // 8) * 8)
    # TODO(synk): for very long T where even BB=8 overflows the budget, add a
    # T-tile grid axis ("arbitrary") with an online (flash-style) softmax.
    return int(bb)


def multiplicative_attention(decoder_hidden, encoder_outputs, Wa):
    # decoder_hidden : (B, H), encoder_outputs : (B, T, H), Wa : (H, H)
    B, T, H = encoder_outputs.shape
    assert decoder_hidden.shape == (B, H)
    assert Wa.shape == (H, H)
    dtype = encoder_outputs.dtype
    itemsize = jnp.dtype(dtype).itemsize

    # Hoisted decoder-side projection: q[b, k] = sum_h Wa[k, h] * dec[b, h].
    # A single well-shaped (B,H)x(H,H) MXU matmul handled by XLA outside the kernel.
    q = jnp.einsum(
        "bh,kh->bk", decoder_hidden, Wa, preferred_element_type=jnp.float32
    ).astype(dtype)

    bb = _choose_block_batch(B, T, H, itemsize)
    b_pad = pl.cdiv(B, bb) * bb
    if b_pad != B:
        pad = b_pad - B
        # Zero-padded rows: scores=0 -> uniform softmax, context=0; sliced off below.
        q_p = jnp.pad(q, ((0, pad), (0, 0)))
        enc_p = jnp.pad(encoder_outputs, ((0, pad), (0, 0), (0, 0)))
    else:
        q_p, enc_p = q, encoder_outputs

    grid = (b_pad // bb,)

    # Explicit VMEM budget: double-buffered per-step blocks plus headroom, clamped
    # to a range that is safe on all of v5e / v6e / v7x.
    step_bytes = bb * (T * H + 2 * H + T) * itemsize
    vmem_limit = int(min(48 << 20, max(16 << 20, 3 * step_bytes + (2 << 20))))

    context, attn = pl.pallas_call(
        _mult_attn_kernel,
        out_shape=(
            jax.ShapeDtypeStruct((b_pad, H), dtype),
            jax.ShapeDtypeStruct((b_pad, T), dtype),
        ),
        grid_spec=pltpu.PrefetchScalarGridSpec(
            num_scalar_prefetch=0,
            grid=grid,
            in_specs=[
                pl.BlockSpec((bb, H), lambda i: (i, 0)),        # q (projected decoder)
                pl.BlockSpec((bb, T, H), lambda i: (i, 0, 0)),  # encoder outputs
            ],
            out_specs=[
                pl.BlockSpec((bb, H), lambda i: (i, 0)),        # context
                pl.BlockSpec((bb, T), lambda i: (i, 0)),        # attention weights
            ],
        ),
        compiler_params=pltpu.CompilerParams(
            # Batch axis is embarrassingly parallel -> sharded across the two
            # TensorCores on v7x (no-op on single-TC v5e/v6e).
            dimension_semantics=("parallel",),
            vmem_limit_bytes=vmem_limit,
        ),
    )(q_p, enc_p)

    return context[:B], attn[:B]


def _reference(decoder_hidden, encoder_outputs, Wa):
    proj = encoder_outputs @ Wa                                   # (B, T, H)
    scores = jnp.sum(decoder_hidden[:, None, :] * proj, axis=2)   # (B, T)
    w = jax.nn.softmax(scores, axis=1)                            # (B, T)
    ctx = jnp.sum(encoder_outputs * w[:, :, None], axis=1)        # (B, H)
    return ctx, w


if __name__ == "__main__":
    B, T, H = 2, 8, 32
    key = jax.random.PRNGKey(0)
    k_wa, k_dec, k_enc = jax.random.split(key, 3)

    # Deterministic parameter init mirroring torch.randn(H, H) * 0.1
    Wa = jax.random.normal(k_wa, (H, H), dtype=jnp.float32) * 0.1
    decoder_hidden = jax.random.normal(k_dec, (B, H), dtype=jnp.float32)
    encoder_outputs = jax.random.normal(k_enc, (B, T, H), dtype=jnp.float32)

    context, attn = multiplicative_attention(decoder_hidden, encoder_outputs, Wa)
    context = jax.block_until_ready(context)
    attn = jax.block_until_ready(attn)

    ctx_ref, attn_ref = _reference(decoder_hidden, encoder_outputs, Wa)
    # Softmax uses the approximate EUP reciprocal (pl.reciprocal(approx=True)),
    # so compare at ~1e-3 rather than float32 epsilon.
    assert context.shape == (B, H) and attn.shape == (B, T)
    assert jnp.allclose(context, ctx_ref, atol=2e-3, rtol=2e-3)
    assert jnp.allclose(attn, attn_ref, atol=2e-3, rtol=2e-3)
    assert jnp.allclose(jnp.sum(attn, axis=1), jnp.ones((B,)), atol=2e-3)

    print("KERNEL_OK")
</pallas_src>

<mosaic_0001>
module attributes {stable_mosaic.version = 11 : i64} {
  func.func @_mult_attn_kernel(%arg0: i32, %arg1: memref<8x32xf32, #tpu.memory_space<vmem>>, %arg2: memref<8x8x32xf32, #tpu.memory_space<vmem>>, %arg3: memref<8x32xf32, #tpu.memory_space<vmem>>, %arg4: memref<8x8xf32, #tpu.memory_space<vmem>>) attributes {dimension_semantics = [#tpu.dimension_semantics<parallel>], iteration_bounds = array<i64: 1>, scalar_prefetch = 0 : i64, scratch_operands = 0 : i64, tpu.core_type = #tpu.core_type<tc>, window_params = [{transform_indices = @transform_0, window_bounds = array<i64: 8, 32>}, {transform_indices = @transform_1, window_bounds = array<i64: 8, 8, 32>}, {transform_indices = @transform_2, window_bounds = array<i64: 8, 32>}, {transform_indices = @transform_3, window_bounds = array<i64: 8, 8>}]} {
    %c0 = arith.constant 0 : index
    %c0_0 = arith.constant 0 : index
    %0 = vector.load %arg1[%c0, %c0_0] : memref<8x32xf32, #tpu.memory_space<vmem>>, vector<8x32xf32>
    %1 = vector.shape_cast %0 : vector<8x32xf32> to vector<8x1x32xf32>
    %c0_1 = arith.constant 0 : index
    %c0_2 = arith.constant 0 : index
    %c0_3 = arith.constant 0 : index
    %2 = vector.load %arg2[%c0_1, %c0_2, %c0_3] : memref<8x8x32xf32, #tpu.memory_space<vmem>>, vector<8x8x32xf32>
    "tpu.trace_start"() <{level = 10 : i32, message = "bqh,bth->bqt"}> : () -> ()
    %cst = arith.constant dense<0.000000e+00> : vector<8x1x8xf32>
    %3 = tpu.matmul %1, %2, %cst {dimension_numbers = #tpu.dot_dimension_numbers<[2], [2], [1], [1], [0, 0, 0, 1, 1, 1], [0], [0]>} : vector<8x1x32xf32>, vector<8x8x32xf32>, vector<8x1x8xf32> -> vector<8x1x8xf32>
    "tpu.trace_stop"() : () -> ()
    %cst_4 = arith.constant dense<0xFF800000> : vector<8x1xf32>
    %4 = vector.multi_reduction <maximumf>, %3, %cst_4 [2] : vector<8x1x8xf32> to vector<8x1xf32>
    %5 = vector.shape_cast %4 : vector<8x1xf32> to vector<8x1x1xf32>
    %6 = vector.broadcast %5 : vector<8x1x1xf32> to vector<8x1x8xf32>
    %7 = arith.subf %3, %6 : vector<8x1x8xf32>
    %8 = math.exp %7 : vector<8x1x8xf32>
    %cst_5 = arith.constant dense<0.000000e+00> : vector<8x1xf32>
    %9 = vector.multi_reduction <add>, %8, %cst_5 [2] : vector<8x1x8xf32> to vector<8x1xf32>
    %10 = vector.shape_cast %9 : vector<8x1xf32> to vector<8x1x1xf32>
    %11 = tpu.reciprocal %10 {approx = true} : vector<8x1x1xf32> -> vector<8x1x1xf32>
    %12 = vector.broadcast %11 : vector<8x1x1xf32> to vector<8x1x8xf32>
    %13 = arith.mulf %8, %12 : vector<8x1x8xf32>
    %14 = vector.shape_cast %13 : vector<8x1x8xf32> to vector<8x8xf32>
    %c0_6 = arith.constant 0 : index
    %c0_7 = arith.constant 0 : index
    %15 = vector.load %arg4[%c0_6, %c0_7] : memref<8x8xf32, #tpu.memory_space<vmem>>, vector<8x8xf32>
    tpu.vector_store %arg4[%c0_6, %c0_7], %14 {strides = array<i32>} : memref<8x8xf32, #tpu.memory_space<vmem>>, vector<8x8xf32>,
    "tpu.trace_start"() <{level = 10 : i32, message = "bqt,bth->bqh"}> : () -> ()
    %cst_8 = arith.constant dense<0.000000e+00> : vector<8x1x32xf32>
    %16 = tpu.matmul %13, %2, %cst_8 {dimension_numbers = #tpu.dot_dimension_numbers<[2], [1], [1], [2], [0, 0, 0, 1, 1, 2], [0], [0]>} : vector<8x1x8xf32>, vector<8x8x32xf32>, vector<8x1x32xf32> -> vector<8x1x32xf32>
    "tpu.trace_stop"() : () -> ()
    %17 = vector.shape_cast %16 : vector<8x1x32xf32> to vector<8x32xf32>
    %c0_9 = arith.constant 0 : index
    %c0_10 = arith.constant 0 : index
    %18 = vector.load %arg3[%c0_9, %c0_10] : memref<8x32xf32, #tpu.memory_space<vmem>>, vector<8x32xf32>
    tpu.vector_store %arg3[%c0_9, %c0_10], %17 {strides = array<i32>} : memref<8x32xf32, #tpu.memory_space<vmem>>, vector<8x32xf32>,
    return
  }
  func.func @transform_0(%arg0: i32) -> (i32, i32) {
    %c0_i32 = arith.constant 0 : i32
    %c0_i32_0 = arith.constant 0 : i32
    return %arg0, %c0_i32 : i32, i32
  }
  func.func @transform_1(%arg0: i32) -> (i32, i32, i32) {
    %c0_i32 = arith.constant 0 : i32
    %c0_i32_0 = arith.constant 0 : i32
    %c0_i32_1 = arith.constant 0 : i32
    return %arg0, %c0_i32, %c0_i32_0 : i32, i32, i32
  }
  func.func @transform_2(%arg0: i32) -> (i32, i32) {
    %c0_i32 = arith.constant 0 : i32
    %c0_i32_0 = arith.constant 0 : i32
    return %arg0, %c0_i32 : i32, i32
  }
  func.func @transform_3(%arg0: i32) -> (i32, i32) {
    %c0_i32 = arith.constant 0 : i32
    %c0_i32_0 = arith.constant 0 : i32
    return %arg0, %c0_i32 : i32, i32
  }
}

</mosaic_0001>

<llo_original>
// kernel: tpu_custom_call.1
$region0: #{tpu_custom_call.1}
  #allocation0 [shape = 'u32[]', space=smem, size = 0x4, offset = 0x4, fixed_abs, tag = 'smem constant byte address 0x4 - core index']
  #allocation1 [shape = 'u32[144,128]{1,0:T(1,128)}', space=vmem, size = 0x12000, scoped, tag = 'internal scratch']
  %s0 = inlined_call_operand.hbm [shape: f32[8,32], index: 0, kind: input, shape index: {}]
  %s1 = inlined_call_operand.hbm [shape: f32[8,8,32], index: 1, kind: input, shape index: {}]
  %s2 = inlined_call_operand.hbm [shape: f32[8,32], index: 2, kind: output, shape index: {0}]
  %s3 = inlined_call_operand.hbm [shape: f32[8,8], index: 3, kind: output, shape index: {1}]
  %4 = xla_tuple %s2, %s3
  %s5 = sld [smem:[#allocation0]]
  $region34: #{tpu_custom_call.1} parent=0
    _
  %s7 = ssub.s32 1, %s5
  %s8 = scalar_select 0, %s7, %s5
  $region1: #{tpu_custom_call.1} parent=0
    #allocation2 [shape = 'u8[4096]{0}', space=vmem, size = 0x1000, scoped, tag = 'input window, operand 0, single buffered']
    #allocation3 [shape = 's32[1]{0}', space=sflag, size = 0x4, scoped, tag = 'scoped memory for tpu_custom_call.1']
    #allocation4 [shape = 's32[1]{0}', space=sflag, size = 0x4, scoped, tag = 'scoped memory for tpu_custom_call.1']
    #allocation5 [shape = 'u8[32768]{0}', space=vmem, size = 0x8000, scoped, tag = 'input window, operand 1, single buffered']
    #allocation6 [shape = 's32[1]{0}', space=sflag, size = 0x4, scoped, tag = 'scoped memory for tpu_custom_call.1']
    #allocation7 [shape = 'u8[4096]{0}', space=vmem, size = 0x1000, scoped, tag = 'output window, operand 0, single buffered']
    #allocation8 [shape = 'u8[4096]{0}', space=vmem, size = 0x1000, scoped, tag = 'output window, operand 1, single buffered']
    #allocation9 [shape = 's32[1]{0}', space=sflag, size = 0x4, scoped, tag = 'scoped memory for tpu_custom_call.1']
    %9 = vsyncpa [#allocation3], 0
    %10 = vsyncpa [#allocation6], 0
    %11 = vsyncpa [#allocation4], 0
    %12 = vsyncpa [#allocation9], 0
    // Predicated region
    $region2: #{tpu_custom_call.1} parent=1 // pred_check
      _
    $region3: #{tpu_custom_call.1} parent=1 // pred_check_branch
      %14 = sbr.rel (0) target = $region5
    $region4: #{tpu_custom_call.1} parent=1 // pred_region
      %s16 = ssub.s32 128, 128
      %17 = vsyncadd [#allocation3], %s16
      %s19 = sshll.u32 [#allocation2], 4
      %s20 = int_to_ptr.vmem [resolvable:$true] %s19
      %22 = dma.hbm_to_vmem [thread:$0]  %s0, 128, %s20, [#allocation3]
    $region5: #{tpu_custom_call.1} parent=1 // pred_fallthru
      _
    // Predicated region
    $region6: #{tpu_custom_call.1} parent=1 // pred_check
      _
    $region7: #{tpu_custom_call.1} parent=1 // pred_check_branch
      %24 = sbr.rel (0) target = $region9
    $region8: #{tpu_custom_call.1} parent=1 // pred_region
      %s26 = ssub.s32 1024, 1024
      %27 = vsyncadd [#allocation6], %s26
      %s28 = sshll.u32 [#allocation5], 4
      %s29 = int_to_ptr.vmem [resolvable:$true] %s28
      %34 = dma.hbm_to_vmem [thread:$0]  %s1, 1024, %s29, [#allocation6], 128, 128, 8
    $region9: #{tpu_custom_call.1} parent=1 // pred_fallthru
      _
    // Predicated region
    $region10: #{tpu_custom_call.1} parent=1 // pred_check
      _
    $region11: #{tpu_custom_call.1} parent=1 // pred_check_branch
      %36 = sbr.rel (0) target = $region13
    $region12: #{tpu_custom_call.1} parent=1 // pred_region
      %37 = dma.done [#allocation3], 128
    $region13: #{tpu_custom_call.1} parent=1 // pred_fallthru
      _
    // Predicated region
    $region14: #{tpu_custom_call.1} parent=1 // pred_check
      _
    $region15: #{tpu_custom_call.1} parent=1 // pred_check_branch
      %39 = sbr.rel (0) target = $region17
    $region16: #{tpu_custom_call.1} parent=1 // pred_region
      %40 = dma.done [#allocation6], 1024
    $region17: #{tpu_custom_call.1} parent=1 // pred_fallthru
      _
    %v41 = vld [vmem:[#allocation2] sm:$0xff]
    %v43 = vcombine.high %v41, %v41
    %v45 = vunpack.c.l.s4 1966171168
    %v46 = vunpack.c.0.s8 %v45
    %v47 = vlaneseq
    %v48 = vshrl.u32 %v47, 7
    %v49 = vsub.s32 %v46, %v48
    %v50 = vrot.slane %v41, %v49
    %v52 = vunpack.c.l.s4 1966171168
    %v53 = vunpack.c.0.s8 %v52
    %v54 = vlaneseq
    %v55 = vshrl.u32 %v54, 7
    %v56 = vsub.s32 %v53, %v55
    %v57 = vrot.slane %v43, %v56
    %v58 = vcombine.high %v50, %v50
    %v59 = vcombine.high %v57, %v57
    %v61 = vunpack.c.l.s4 1966171168
    %v62 = vunpack.c.0.s8 %v61
    %v63 = vlaneseq
    %v64 = vshrl.u32 %v63, 7
    %v65 = vsub.s32 %v62, %v64
    %v66 = vrot.slane %v50, %v65
    %v68 = vunpack.c.l.s4 1966171168
    %v69 = vunpack.c.0.s8 %v68
    %v70 = vlaneseq
    %v71 = vshrl.u32 %v70, 7
    %v72 = vsub.s32 %v69, %v71
    %v73 = vrot.slane %v57, %v72
    %v75 = vunpack.c.l.s4 1966171168
    %v76 = vunpack.c.0.s8 %v75
    %v77 = vlaneseq
    %v78 = vshrl.u32 %v77, 7
    %v79 = vsub.s32 %v76, %v78
    %v80 = vrot.slane %v58, %v79
    %v82 = vunpack.c.l.s4 1966171168
    %v83 = vunpack.c.0.s8 %v82
    %v84 = vlaneseq
    %v85 = vshrl.u32 %v84, 7
    %v86 = vsub.s32 %v83, %v85
    %v87 = vrot.slane %v59, %v86
    %v88 = vcombine.high %v66, %v66
    %v89 = vcombine.high %v73, %v73
    %v90 = vcombine.high %v80, %v80
    %v91 = vcombine.high %v87, %v87
    %v92 = vld [vmem:[#allocation5] sm:$0xff]
    %v93 = vld [vmem:[#allocation5 + $0x8] sm:$0xff]
    %v94 = vld [vmem:[#allocation5 + $0x10] sm:$0xff]
    %v95 = vld [vmem:[#allocation5 + $0x18] sm:$0xff]
    %v96 = vld [vmem:[#allocation5 + $0x20] sm:$0xff]
    %v97 = vld [vmem:[#allocation5 + $0x28] sm:$0xff]
    %v98 = vld [vmem:[#allocation5 + $0x30] sm:$0xff]
    %v99 = vld [vmem:[#allocation5 + $0x38] sm:$0xff]
    %vm100 = vcmask 261120
    %v101 = vsel %vm100, %v66, 0
    %v104 = vsel %vm100, %v92, 0
    %106 = vmatprep.subr.mxu0 0.0
    %107 = vmatpush1.xpose.msra.mxu0 %v104
    %108 = vmatprep.subr.mxu0 0.0
    %109 = vmatpush1.xpose.msra.mxu0 0.0
    %110 = vmatprep.subr.mxu0 0.0
    %111 = vmatpush1.xpose.msra.mxu0 0.0
    %112 = vmatprep.subr.mxu0 0.0
    %113 = vmatpush1.xpose.msra.mxu0 0.0
    %114 = vmatprep.subr.mxu0 0.0
    %115 = vmatpush1.xpose.msra.mxu0 0.0
    %116 = vmatprep.subr.mxu0 0.0
    %117 = vmatpush1.xpose.msra.mxu0 0.0
    %118 = vmatprep.subr.mxu0 0.0
    %119 = vmatpush1.xpose.msra.mxu0 0.0
    %120 = vmatprep.subr.mxu0 0.0
    %121 = vmatpush1.xpose.msra.mxu0 0.0
    %122 = vmatprep.subr.mxu0 0.0
    %123 = vmatpush1.xpose.msra.mxu0 0.0
    %124 = vmatprep.subr.mxu0 0.0
    %125 = vmatpush1.xpose.msra.mxu0 0.0
    %126 = vmatprep.subr.mxu0 0.0
    %127 = vmatpush1.xpose.msra.mxu0 0.0
    %128 = vmatprep.subr.mxu0 0.0
    %129 = vmatpush1.xpose.msra.mxu0 0.0
    %130 = vmatprep.subr.mxu0 0.0
    %131 = vmatpush1.xpose.msra.mxu0 0.0
    %132 = vmatprep.subr.mxu0 0.0
    %133 = vmatpush1.xpose.msra.mxu0 0.0
    %134 = vmatprep.subr.mxu0 0.0
    %135 = vmatpush1.xpose.msra.mxu0 0.0
    %136 = vmatprep.subr.mxu0 0.0
    %137 = vmatpush1.xpose.msra.mxu0 0.0
    %138 = vmatprep.subr.mxu0 0.0
    %139 = vmatpush1.xpose.msra.mxu0 0.0
    %140 = vmatprep.subr.mxu0 0.0
    %141 = vmatpush1.xpose.msra.mxu0 0.0
    %142 = vmatprep.subr.mxu0 0.0
    %143 = vmatpush1.xpose.msra.mxu0 0.0
    %144 = vmatprep.subr.mxu0 0.0
    %145 = vmatpush1.xpose.msra.mxu0 0.0
    %146 = vmatprep.subr.mxu0 0.0
    %147 = vmatpush1.xpose.msra.mxu0 0.0
    %148 = vmatprep.subr.mxu0 0.0
    %149 = vmatpush1.xpose.msra.mxu0 0.0
    %150 = vmatprep.subr.mxu0 0.0
    %151 = vmatpush1.xpose.msra.mxu0 0.0
    %152 = vmatprep.subr.mxu0 0.0
    %153 = vmatpush1.xpose.msra.mxu0 0.0
    %154 = vmatprep.subr.mxu0 0.0
    %155 = vmatpush1.xpose.msra.mxu0 0.0
    %156 = vmatprep.subr.mxu0 0.0
    %157 = vmatpush1.xpose.msra.mxu0 0.0
    %158 = vmatprep.subr.mxu0 0.0
    %159 = vmatpush1.xpose.msra.mxu0 0.0
    %160 = vmatprep.subr.mxu0 0.0
    %161 = vmatpush1.xpose.msra.mxu0 0.0
    %162 = vmatprep.subr.mxu0 0.0
    %163 = vmatpush1.xpose.msra.mxu0 0.0
    %164 = vmatprep.subr.mxu0 0.0
    %165 = vmatpush1.xpose.msra.mxu0 0.0
    %166 = vmatprep.subr.mxu0 0.0
    %167 = vmatpush1.xpose.msra.mxu0 0.0
    %168 = vmatprep.subr.mxu0 0.0
    %169 = vmatpush1.xpose.msra.mxu0 0.0
    %170 = vmatprep.mubr.f32.mxu0 0.0
    %171 = vmatmul.mubr.f32.gmra.mrb[0].mxu0 %v101
    %v172 = vpop.f32.mrb[0].mxu0
    %v173 = vadd.f32 0.0, %v172
    %v174 = vpop.f32.mrb[0].mxu0
    %175 = vdwg.mxu0
    %v176 = vsel %vm100, %v80, 0
    %v179 = vsel %vm100, %v93, 0
    %181 = vmatprep.subr.mxu0 0.0
    %182 = vmatpush1.xpose.msra.mxu0 %v179
    %183 = vmatprep.subr.mxu0 0.0
    %184 = vmatpush1.xpose.msra.mxu0 0.0
    %185 = vmatprep.subr.mxu0 0.0
    %186 = vmatpush1.xpose.msra.mxu0 0.0
    %187 = vmatprep.subr.mxu0 0.0
    %188 = vmatpush1.xpose.msra.mxu0 0.0
    %189 = vmatprep.subr.mxu0 0.0
    %190 = vmatpush1.xpose.msra.mxu0 0.0
    %191 = vmatprep.subr.mxu0 0.0
    %192 = vmatpush1.xpose.msra.mxu0 0.0
    %193 = vmatprep.subr.mxu0 0.0
    %194 = vmatpush1.xpose.msra.mxu0 0.0
    %195 = vmatprep.subr.mxu0 0.0
    %196 = vmatpush1.xpose.msra.mxu0 0.0
    %197 = vmatprep.subr.mxu0 0.0
    %198 = vmatpush1.xpose.msra.mxu0 0.0
    %199 = vmatprep.subr.mxu0 0.0
    %200 = vmatpush1.xpose.msra.mxu0 0.0
    %201 = vmatprep.subr.mxu0 0.0
    %202 = vmatpush1.xpose.msra.mxu0 0.0
    %203 = vmatprep.subr.mxu0 0.0
    %204 = vmatpush1.xpose.msra.mxu0 0.0
    %205 = vmatprep.subr.mxu0 0.0
    %206 = vmatpush1.xpose.msra.mxu0 0.0
    %207 = vmatprep.subr.mxu0 0.0
    %208 = vmatpush1.xpose.msra.mxu0 0.0
    %209 = vmatprep.subr.mxu0 0.0
    %210 = vmatpush1.xpose.msra.mxu0 0.0
    %211 = vmatprep.subr.mxu0 0.0
    %212 = vmatpush1.xpose.msra.mxu0 0.0
    %213 = vmatprep.subr.mxu0 0.0
    %214 = vmatpush1.xpose.msra.mxu0 0.0
    %215 = vmatprep.subr.mxu0 0.0
    %216 = vmatpush1.xpose.msra.mxu0 0.0
    %217 = vmatprep.subr.mxu0 0.0
    %218 = vmatpush1.xpose.msra.mxu0 0.0
    %219 = vmatprep.subr.mxu0 0.0
    %220 = vmatpush1.xpose.msra.mxu0 0.0
    %221 = vmatprep.subr.mxu0 0.0
    %222 = vmatpush1.xpose.msra.mxu0 0.0
    %223 = vmatprep.subr.mxu0 0.0
    %224 = vmatpush1.xpose.msra.mxu0 0.0
    %225 = vmatprep.subr.mxu0 0.0
    %226 = vmatpush1.xpose.msra.mxu0 0.0
    %227 = vmatprep.subr.mxu0 0.0
    %228 = vmatpush1.xpose.msra.mxu0 0.0
    %229 = vmatprep.subr.mxu0 0.0
    %230 = vmatpush1.xpose.msra.mxu0 0.0
    %231 = vmatprep.subr.mxu0 0.0
    %232 = vmatpush1.xpose.msra.mxu0 0.0
    %233 = vmatprep.subr.mxu0 0.0
    %234 = vmatpush1.xpose.msra.mxu0 0.0
    %235 = vmatprep.subr.mxu0 0.0
    %236 = vmatpush1.xpose.msra.mxu0 0.0
    %237 = vmatprep.subr.mxu0 0.0
    %238 = vmatpush1.xpose.msra.mxu0 0.0
    %239 = vmatprep.subr.mxu0 0.0
    %240 = vmatpush1.xpose.msra.mxu0 0.0
    %241 = vmatprep.subr.mxu0 0.0
    %242 = vmatpush1.xpose.msra.mxu0 0.0
    %243 = vmatprep.subr.mxu0 0.0
    %244 = vmatpush1.xpose.msra.mxu0 0.0
    %245 = vmatprep.mubr.f32.mxu0 0.0
    %246 = vmatmul.mubr.f32.gmra.mrb[0].mxu0 %v176
    %v247 = vpop.f32.mrb[0].mxu0
    %v248 = vadd.f32 0.0, %v247
    %v249 = vpop.f32.mrb[0].mxu0
    %250 = vdwg.mxu0
    %v251 = vsel %vm100, %v88, 0
    %v254 = vsel %vm100, %v94, 0
    %256 = vmatprep.subr.mxu0 0.0
    %257 = vmatpush1.xpose.msra.mxu0 %v254
    %258 = vmatprep.subr.mxu0 0.0
    %259 = vmatpush1.xpose.msra.mxu0 0.0
    %260 = vmatprep.subr.mxu0 0.0
    %261 = vmatpush1.xpose.msra.mxu0 0.0
    %262 = vmatprep.subr.mxu0 0.0
    %263 = vmatpush1.xpose.msra.mxu0 0.0
    %264 = vmatprep.subr.mxu0 0.0
    %265 = vmatpush1.xpose.msra.mxu0 0.0
    %266 = vmatprep.subr.mxu0 0.0
    %267 = vmatpush1.xpose.msra.mxu0 0.0
    %268 = vmatprep.subr.mxu0 0.0
    %269 = vmatpush1.xpose.msra.mxu0 0.0
    %270 = vmatprep.subr.mxu0 0.0
    %271 = vmatpush1.xpose.msra.mxu0 0.0
    %272 = vmatprep.subr.mxu0 0.0
    %273 = vmatpush1.xpose.msra.mxu0 0.0
    %274 = vmatprep.subr.mxu0 0.0
    %275 = vmatpush1.xpose.msra.mxu0 0.0
    %276 = vmatprep.subr.mxu0 0.0
    %277 = vmatpush1.xpose.msra.mxu0 0.0
    %278 = vmatprep.subr.mxu0 0.0
    %279 = vmatpush1.xpose.msra.mxu0 0.0
    %280 = vmatprep.subr.mxu0 0.0
    %281 = vmatpush1.xpose.msra.mxu0 0.0
    %282 = vmatprep.subr.mxu0 0.0
    %283 = vmatpush1.xpose.msra.mxu0 0.0
    %284 = vmatprep.subr.mxu0 0.0
    %285 = vmatpush1.xpose.msra.mxu0 0.0
    %286 = vmatprep.subr.mxu0 0.0
    %287 = vmatpush1.xpose.msra.mxu0 0.0
    %288 = vmatprep.subr.mxu0 0.0
    %289 = vmatpush1.xpose.msra.mxu0 0.0
    %290 = vmatprep.subr.mxu0 0.0
    %291 = vmatpush1.xpose.msra.mxu0 0.0
    %292 = vmatprep.subr.mxu0 0.0
    %293 = vmatpush1.xpose.msra.mxu0 0.0
    %294 = vmatprep.subr.mxu0 0.0
    %295 = vmatpush1.xpose.msra.mxu0 0.0
    %296 = vmatprep.subr.mxu0 0.0
    %297 = vmatpush1.xpose.msra.mxu0 0.0
    %298 = vmatprep.subr.mxu0 0.0
    %299 = vmatpush1.xpose.msra.mxu0 0.0
    %300 = vmatprep.subr.mxu0 0.0
    %301 = vmatpush1.xpose.msra.mxu0 0.0
    %302 = vmatprep.subr.mxu0 0.0
    %303 = vmatpush1.xpose.msra.mxu0 0.0
    %304 = vmatprep.subr.mxu0 0.0
    %305 = vmatpush1.xpose.msra.mxu0 0.0
    %306 = vmatprep.subr.mxu0 0.0
    %307 = vmatpush1.xpose.msra.mxu0 0.0
    %308 = vmatprep.subr.mxu0 0.0
    %309 = vmatpush1.xpose.msra.mxu0 0.0
    %310 = vmatprep.subr.mxu0 0.0
    %311 = vmatpush1.xpose.msra.mxu0 0.0
    %312 = vmatprep.subr.mxu0 0.0
    %313 = vmatpush1.xpose.msra.mxu0 0.0
    %314 = vmatprep.subr.mxu0 0.0
    %315 = vmatpush1.xpose.msra.mxu0 0.0
    %316 = vmatprep.subr.mxu0 0.0
    %317 = vmatpush1.xpose.msra.mxu0 0.0
    %318 = vmatprep.subr.mxu0 0.0
    %319 = vmatpush1.xpose.msra.mxu0 0.0
    %320 = vmatprep.mubr.f32.mxu0 0.0
    %321 = vmatmul.mubr.f32.gmra.mrb[0].mxu0 %v251
    %v322 = vpop.f32.mrb[0].mxu0
    %v323 = vadd.f32 0.0, %v322
    %v324 = vpop.f32.mrb[0].mxu0
    %325 = vdwg.mxu0
    %v326 = vsel %vm100, %v90, 0
    %v329 = vsel %vm100, %v95, 0
    %331 = vmatprep.subr.mxu0 0.0
    %332 = vmatpush1.xpose.msra.mxu0 %v329
    %333 = vmatprep.subr.mxu0 0.0
    %334 = vmatpush1.xpose.msra.mxu0 0.0
    %335 = vmatprep.subr.mxu0 0.0
    %336 = vmatpush1.xpose.msra.mxu0 0.0
    %337 = vmatprep.subr.mxu0 0.0
    %338 = vmatpush1.xpose.msra.mxu0 0.0
    %339 = vmatprep.subr.mxu0 0.0
    %340 = vmatpush1.xpose.msra.mxu0 0.0
    %341 = vmatprep.subr.mxu0 0.0
    %342 = vmatpush1.xpose.msra.mxu0 0.0
    %343 = vmatprep.subr.mxu0 0.0
    %344 = vmatpush1.xpose.msra.mxu0 0.0
    %345 = vmatprep.subr.mxu0 0.0
    %346 = vmatpush1.xpose.msra.mxu0 0.0
    %347 = vmatprep.subr.mxu0 0.0
    %348 = vmatpush1.xpose.msra.mxu0 0.0
    %349 = vmatprep.subr.mxu0 0.0
    %350 = vmatpush1.xpose.msra.mxu0 0.0
    %351 = vmatprep.subr.mxu0 0.0
    %352 = vmatpush1.xpose.msra.mxu0 0.0
    %353 = vmatprep.subr.mxu0 0.0
    %354 = vmatpush1.xpose.msra.mxu0 0.0
    %355 = vmatprep.subr.mxu0 0.0
    %356 = vmatpush1.xpose.msra.mxu0 0.0
    %357 = vmatprep.subr.mxu0 0.0
    %358 = vmatpush1.xpose.msra.mxu0 0.0
    %359 = vmatprep.subr.mxu0 0.0
    %360 = vmatpush1.xpose.msra.mxu0 0.0
    %361 = vmatprep.subr.mxu0 0.0
    %362 = vmatpush1.xpose.msra.mxu0 0.0
    %363 = vmatprep.subr.mxu0 0.0
    %364 = vmatpush1.xpose.msra.mxu0 0.0
    %365 = vmatprep.subr.mxu0 0.0
    %366 = vmatpush1.xpose.msra.mxu0 0.0
    %367 = vmatprep.subr.mxu0 0.0
    %368 = vmatpush1.xpose.msra.mxu0 0.0
    %369 = vmatprep.subr.mxu0 0.0
    %370 = vmatpush1.xpose.msra.mxu0 0.0
    %371 = vmatprep.subr.mxu0 0.0
    %372 = vmatpush1.xpose.msra.mxu0 0.0
    %373 = vmatprep.subr.mxu0 0.0
    %374 = vmatpush1.xpose.msra.mxu0 0.0
    %375 = vmatprep.subr.mxu0 0.0
    %376 = vmatpush1.xpose.msra.mxu0 0.0
    %377 = vmatprep.subr.mxu0 0.0
    %378 = vmatpush1.xpose.msra.mxu0 0.0
    %379 = vmatprep.subr.mxu0 0.0
    %380 = vmatpush1.xpose.msra.mxu0 0.0
    %381 = vmatprep.subr.mxu0 0.0
    %382 = vmatpush1.xpose.msra.mxu0 0.0
    %383 = vmatprep.subr.mxu0 0.0
    %384 = vmatpush1.xpose.msra.mxu0 0.0
    %385 = vmatprep.subr.mxu0 0.0
    %386 = vmatpush1.xpose.msra.mxu0 0.0
    %387 = vmatprep.subr.mxu0 0.0
    %388 = vmatpush1.xpose.msra.mxu0 0.0
    %389 = vmatprep.subr.mxu0 0.0
    %390 = vmatpush1.xpose.msra.mxu0 0.0
    %391 = vmatprep.subr.mxu0 0.0
    %392 = vmatpush1.xpose.msra.mxu0 0.0
    %393 = vmatprep.subr.mxu0 0.0
    %394 = vmatpush1.xpose.msra.mxu0 0.0
    %395 = vmatprep.mubr.f32.mxu0 0.0
    %396 = vmatmul.mubr.f32.gmra.mrb[0].mxu0 %v326
    %v397 = vpop.f32.mrb[0].mxu0
    %v398 = vadd.f32 0.0, %v397
    %v399 = vpop.f32.mrb[0].mxu0
    %400 = vdwg.mxu0
    %v401 = vsel %vm100, %v73, 0
    %v404 = vsel %vm100, %v96, 0
    %406 = vmatprep.subr.mxu0 0.0
    %407 = vmatpush1.xpose.msra.mxu0 %v404
    %408 = vmatprep.subr.mxu0 0.0
    %409 = vmatpush1.xpose.msra.mxu0 0.0
    %410 = vmatprep.subr.mxu0 0.0
    %411 = vmatpush1.xpose.msra.mxu0 0.0
    %412 = vmatprep.subr.mxu0 0.0
    %413 = vmatpush1.xpose.msra.mxu0 0.0
    %414 = vmatprep.subr.mxu0 0.0
    %415 = vmatpush1.xpose.msra.mxu0 0.0
    %416 = vmatprep.subr.mxu0 0.0
    %417 = vmatpush1.xpose.msra.mxu0 0.0
    %418 = vmatprep.subr.mxu0 0.0
    %419 = vmatpush1.xpose.msra.mxu0 0.0
    %420 = vmatprep.subr.mxu0 0.0
    %421 = vmatpush1.xpose.msra.mxu0 0.0
    %422 = vmatprep.subr.mxu0 0.0
    %423 = vmatpush1.xpose.msra.mxu0 0.0
    %424 = vmatprep.subr.mxu0 0.0
    %425 = vmatpush1.xpose.msra.mxu0 0.0
    %426 = vmatprep.subr.mxu0 0.0
    %427 = vmatpush1.xpose.msra.mxu0 0.0
    %428 = vmatprep.subr.mxu0 0.0
    %429 = vmatpush1.xpose.msra.mxu0 0.0
    %430 = vmatprep.subr.mxu0 0.0
    %431 = vmatpush1.xpose.msra.mxu0 0.0
    %432 = vmatprep.subr.mxu0 0.0
    %433 = vmatpush1.xpose.msra.mxu0 0.0
    %434 = vmatprep.subr.mxu0 0.0
    %435 = vmatpush1.xpose.msra.mxu0 0.0
    %436 = vmatprep.subr.mxu0 0.0
    %437 = vmatpush1.xpose.msra.mxu0 0.0
    %438 = vmatprep.subr.mxu0 0.0
    %439 = vmatpush1.xpose.msra.mxu0 0.0
    %440 = vmatprep.subr.mxu0 0.0
    %441 = vmatpush1.xpose.msra.mxu0 0.0
    %442 = vmatprep.subr.mxu0 0.0
    %443 = vmatpush1.xpose.msra.mxu0 0.0
    %444 = vmatprep.subr.mxu0 0.0
    %445 = vmatpush1.xpose.msra.mxu0 0.0
    %446 = vmatprep.subr.mxu0 0.0
    %447 = vmatpush1.xpose.msra.mxu0 0.0
    %448 = vmatprep.subr.mxu0 0.0
    %449 = vmatpush1.xpose.msra.mxu0 0.0
    %450 = vmatprep.subr.mxu0 0.0
    %451 = vmatpush1.xpose.msra.mxu0 0.0
    %452 = vmatprep.subr.mxu0 0.0
    %453 = vmatpush1.xpose.msra.mxu0 0.0
    %454 = vmatprep.subr.mxu0 0.0
    %455 = vmatpush1.xpose.msra.mxu0 0.0
    %456 = vmatprep.subr.mxu0 0.0
    %457 = vmatpush1.xpose.msra.mxu0 0.0
    %458 = vmatprep.subr.mxu0 0.0
    %459 = vmatpush1.xpose.msra.mxu0 0.0
    %460 = vmatprep.subr.mxu0 0.0
    %461 = vmatpush1.xpose.msra.mxu0 0.0
    %462 = vmatprep.subr.mxu0 0.0
    %463 = vmatpush1.xpose.msra.mxu0 0.0
    %464 = vmatprep.subr.mxu0 0.0
    %465 = vmatpush1.xpose.msra.mxu0 0.0
    %466 = vmatprep.subr.mxu0 0.0
    %467 = vmatpush1.xpose.msra.mxu0 0.0
    %468 = vmatprep.subr.mxu0 0.0
    %469 = vmatpush1.xpose.msra.mxu0 0.0
    %470 = vmatprep.mubr.f32.mxu0 0.0
    %471 = vmatmul.mubr.f32.gmra.mrb[0].mxu0 %v401
    %v472 = vpop.f32.mrb[0].mxu0
    %v473 = vadd.f32 0.0, %v472
    %v474 = vpop.f32.mrb[0].mxu0
    %475 = vdwg.mxu0
    %v476 = vsel %vm100, %v87, 0
    %v479 = vsel %vm100, %v97, 0
    %481 = vmatprep.subr.mxu0 0.0
    %482 = vmatpush1.xpose.msra.mxu0 %v479
    %483 = vmatprep.subr.mxu0 0.0
    %484 = vmatpush1.xpose.msra.mxu0 0.0
    %485 = vmatprep.subr.mxu0 0.0
    %486 = vmatpush1.xpose.msra.mxu0 0.0
    %487 = vmatprep.subr.mxu0 0.0
    %488 = vmatpush1.xpose.msra.mxu0 0.0
    %489 = vmatprep.subr.mxu0 0.0
    %490 = vmatpush1.xpose.msra.mxu0 0.0
    %491 = vmatprep.subr.mxu0 0.0
    %492 = vmatpush1.xpose.msra.mxu0 0.0
    %493 = vmatprep.subr.mxu0 0.0
    %494 = vmatpush1.xpose.msra.mxu0 0.0
    %495 = vmatprep.subr.mxu0 0.0
    %496 = vmatpush1.xpose.msra.mxu0 0.0
    %497 = vmatprep.subr.mxu0 0.0
    %498 = vmatpush1.xpose.msra.mxu0 0.0
    %499 = vmatprep.subr.mxu0 0.0
    %500 = vmatpush1.xpose.msra.mxu0 0.0
    %501 = vmatprep.subr.mxu0 0.0
    %502 = vmatpush1.xpose.msra.mxu0 0.0
    %503 = vmatprep.subr.mxu0 0.0
    %504 = vmatpush1.xpose.msra.mxu0 0.0
    %505 = vmatprep.subr.mxu0 0.0
    %506 = vmatpush1.xpose.msra.mxu0 0.0
    %507 = vmatprep.subr.mxu0 0.0
    %508 = vmatpush1.xpose.msra.mxu0 0.0
    %509 = vmatprep.subr.mxu0 0.0
    %510 = vmatpush1.xpose.msra.mxu0 0.0
    %511 = vmatprep.subr.mxu0 0.0
    %512 = vmatpush1.xpose.msra.mxu0 0.0
    %513 = vmatprep.subr.mxu0 0.0
    %514 = vmatpush1.xpose.msra.mxu0 0.0
    %515 = vmatprep.subr.mxu0 0.0
    %516 = vmatpush1.xpose.msra.mxu0 0.0
    %517 = vmatprep.subr.mxu0 0.0
    %518 = vmatpush1.xpose.msra.mxu0 0.0
    %519 = vmatprep.subr.mxu0 0.0
    %520 = vmatpush1.xpose.msra.mxu0 0.0
    %521 = vmatprep.subr.mxu0 0.0
    %522 = vmatpush1.xpose.msra.mxu0 0.0
    %523 = vmatprep.subr.mxu0 0.0
    %524 = vmatpush1.xpose.msra.mxu0 0.0
    %525 = vmatprep.subr.mxu0 0.0
    %526 = vmatpush1.xpose.msra.mxu0 0.0
    %527 = vmatprep.subr.mxu0 0.0
    %528 = vmatpush1.xpose.msra.mxu0 0.0
    %529 = vmatprep.subr.mxu0 0.0
    %530 = vmatpush1.xpose.msra.mxu0 0.0
    %531 = vmatprep.subr.mxu0 0.0
    %532 = vmatpush1.xpose.msra.mxu0 0.0
    %533 = vmatprep.subr.mxu0 0.0
    %534 = vmatpush1.xpose.msra.mxu0 0.0
    %535 = vmatprep.subr.mxu0 0.0
    %536 = vmatpush1.xpose.msra.mxu0 0.0
    %537 = vmatprep.subr.mxu0 0.0
    %538 = vmatpush1.xpose.msra.mxu0 0.0
    %539 = vmatprep.subr.mxu0 0.0
    %540 = vmatpush1.xpose.msra.mxu0 0.0
    %541 = vmatprep.subr.mxu0 0.0
    %542 = vmatpush1.xpose.msra.mxu0 0.0
    %543 = vmatprep.subr.mxu0 0.0
    %544 = vmatpush1.xpose.msra.mxu0 0.0
    %545 = vmatprep.mubr.f32.mxu0 0.0
    %546 = vmatmul.mubr.f32.gmra.mrb[0].mxu0 %v476
    %v547 = vpop.f32.mrb[0].mxu0
    %v548 = vadd.f32 0.0, %v547
    %v549 = vpop.f32.mrb[0].mxu0
    %550 = vdwg.mxu0
    %v551 = vsel %vm100, %v89, 0
    %v554 = vsel %vm100, %v98, 0
    %556 = vmatprep.subr.mxu0 0.0
    %557 = vmatpush1.xpose.msra.mxu0 %v554
    %558 = vmatprep.subr.mxu0 0.0
    %559 = vmatpush1.xpose.msra.mxu0 0.0
    %560 = vmatprep.subr.mxu0 0.0
    %561 = vmatpush1.xpose.msra.mxu0 0.0
    %562 = vmatprep.subr.mxu0 0.0
    %563 = vmatpush1.xpose.msra.mxu0 0.0
    %564 = vmatprep.subr.mxu0 0.0
    %565 = vmatpush1.xpose.msra.mxu0 0.0
    %566 = vmatprep.subr.mxu0 0.0
    %567 = vmatpush1.xpose.msra.mxu0 0.0
    %568 = vmatprep.subr.mxu0 0.0
    %569 = vmatpush1.xpose.msra.mxu0 0.0
    %570 = vmatprep.subr.mxu0 0.0
    %571 = vmatpush1.xpose.msra.mxu0 0.0
    %572 = vmatprep.subr.mxu0 0.0
    %573 = vmatpush1.xpose.msra.mxu0 0.0
    %574 = vmatprep.subr.mxu0 0.0
    %575 = vmatpush1.xpose.msra.mxu0 0.0
    %576 = vmatprep.subr.mxu0 0.0
    %577 = vmatpush1.xpose.msra.mxu0 0.0
    %578 = vmatprep.subr.mxu0 0.0
    %579 = vmatpush1.xpose.msra.mxu0 0.0
    %580 = vmatprep.subr.mxu0 0.0
    %581 = vmatpush1.xpose.msra.mxu0 0.0
    %582 = vmatprep.subr.mxu0 0.0
    %583 = vmatpush1.xpose.msra.mxu0 0.0
    %584 = vmatprep.subr.mxu0 0.0
    %585 = vmatpush1.xpose.msra.mxu0 0.0
    %586 = vmatprep.subr.mxu0 0.0
    %587 = vmatpush1.xpose.msra.mxu0 0.0
    %588 = vmatprep.subr.mxu0 0.0
    %589 = vmatpush1.xpose.msra.mxu0 0.0
    %590 = vmatprep.subr.mxu0 0.0
    %591 = vmatpush1.xpose.msra.mxu0 0.0
    %592 = vmatprep.subr.mxu0 0.0
    %593 = vmatpush1.xpose.msra.mxu0 0.0
    %594 = vmatprep.subr.mxu0 0.0
    %595 = vmatpush1.xpose.msra.mxu0 0.0
    %596 = vmatprep.subr.mxu0 0.0
    %597 = vmatpush1.xpose.msra.mxu0 0.0
    %598 = vmatprep.subr.mxu0 0.0
    %599 = vmatpush1.xpose.msra.mxu0 0.0
    %600 = vmatprep.subr.mxu0 0.0
    %601 = vmatpush1.xpose.msra.mxu0 0.0
    %602 = vmatprep.subr.mxu0 0.0
    %603 = vmatpush1.xpose.msra.mxu0 0.0
    %604 = vmatprep.subr.mxu0 0.0
    %605 = vmatpush1.xpose.msra.mxu0 0.0
    %606 = vmatprep.subr.mxu0 0.0
    %607 = vmatpush1.xpose.msra.mxu0 0.0
    %608 = vmatprep.subr.mxu0 0.0
    %609 = vmatpush1.xpose.msra.mxu0 0.0
    %610 = vmatprep.subr.mxu0 0.0
    %611 = vmatpush1.xpose.msra.mxu0 0.0
    %612 = vmatprep.subr.mxu0 0.0
    %613 = vmatpush1.xpose.msra.mxu0 0.0
    %614 = vmatprep.subr.mxu0 0.0
    %615 = vmatpush1.xpose.msra.mxu0 0.0
    %616 = vmatprep.subr.mxu0 0.0
    %617 = vmatpush1.xpose.msra.mxu0 0.0
    %618 = vmatprep.subr.mxu0 0.0
    %619 = vmatpush1.xpose.msra.mxu0 0.0
    %620 = vmatprep.mubr.f32.mxu0 0.0
    %621 = vmatmul.mubr.f32.gmra.mrb[0].mxu0 %v551
    %v622 = vpop.f32.mrb[0].mxu0
    %v623 = vadd.f32 0.0, %v622
    %v624 = vpop.f32.mrb[0].mxu0
    %625 = vdwg.mxu0
    %v626 = vsel %vm100, %v91, 0
    %v629 = vsel %vm100, %v99, 0
    %631 = vmatprep.subr.mxu0 0.0
    %632 = vmatpush1.xpose.msra.mxu0 %v629
    %633 = vmatprep.subr.mxu0 0.0
    %634 = vmatpush1.xpose.msra.mxu0 0.0
    %635 = vmatprep.subr.mxu0 0.0
    %636 = vmatpush1.xpose.msra.mxu0 0.0
    %637 = vmatprep.subr.mxu0 0.0
    %638 = vmatpush1.xpose.msra.mxu0 0.0
    %639 = vmatprep.subr.mxu0 0.0
    %640 = vmatpush1.xpose.msra.mxu0 0.0
    %641 = vmatprep.subr.mxu0 0.0
    %642 = vmatpush1.xpose.msra.mxu0 0.0
    %643 = vmatprep.subr.mxu0 0.0
    %644 = vmatpush1.xpose.msra.mxu0 0.0
    %645 = vmatprep.subr.mxu0 0.0
    %646 = vmatpush1.xpose.msra.mxu0 0.0
    %647 = vmatprep.subr.mxu0 0.0
    %648 = vmatpush1.xpose.msra.mxu0 0.0
    %649 = vmatprep.subr.mxu0 0.0
    %650 = vmatpush1.xpose.msra.mxu0 0.0
    %651 = vmatprep.subr.mxu0 0.0
    %652 = vmatpush1.xpose.msra.mxu0 0.0
    %653 = vmatprep.subr.mxu0 0.0
    %654 = vmatpush1.xpose.msra.mxu0 0.0
    %655 = vmatprep.subr.mxu0 0.0
    %656 = vmatpush1.xpose.msra.mxu0 0.0
    %657 = vmatprep.subr.mxu0 0.0
    %658 = vmatpush1.xpose.msra.mxu0 0.0
    %659 = vmatprep.subr.mxu0 0.0
    %660 = vmatpush1.xpose.msra.mxu0 0.0
    %661 = vmatprep.subr.mxu0 0.0
    %662 = vmatpush1.xpose.msra.mxu0 0.0
    %663 = vmatprep.subr.mxu0 0.0
    %664 = vmatpush1.xpose.msra.mxu0 0.0
    %665 = vmatprep.subr.mxu0 0.0
    %666 = vmatpush1.xpose.msra.mxu0 0.0
    %667 = vmatprep.subr.mxu0 0.0
    %668 = vmatpush1.xpose.msra.mxu0 0.0
    %669 = vmatprep.subr.mxu0 0.0
    %670 = vmatpush1.xpose.msra.mxu0 0.0
    %671 = vmatprep.subr.mxu0 0.0
    %672 = vmatpush1.xpose.msra.mxu0 0.0
    %673 = vmatprep.subr.mxu0 0.0
    %674 = vmatpush1.xpose.msra.mxu0 0.0
    %675 = vmatprep.subr.mxu0 0.0
    %676 = vmatpush1.xpose.msra.mxu0 0.0
    %677 = vmatprep.subr.mxu0 0.0
    %678 = vmatpush1.xpose.msra.mxu0 0.0
    %679 = vmatprep.subr.mxu0 0.0
    %680 = vmatpush1.xpose.msra.mxu0 0.0
    %681 = vmatprep.subr.mxu0 0.0
    %682 = vmatpush1.xpose.msra.mxu0 0.0
    %683 = vmatprep.subr.mxu0 0.0
    %684 = vmatpush1.xpose.msra.mxu0 0.0
    %685 = vmatprep.subr.mxu0 0.0
    %686 = vmatpush1.xpose.msra.mxu0 0.0
    %687 = vmatprep.subr.mxu0 0.0
    %688 = vmatpush1.xpose.msra.mxu0 0.0
    %689 = vmatprep.subr.mxu0 0.0
    %690 = vmatpush1.xpose.msra.mxu0 0.0
    %691 = vmatprep.subr.mxu0 0.0
    %692 = vmatpush1.xpose.msra.mxu0 0.0
    %693 = vmatprep.subr.mxu0 0.0
    %694 = vmatpush1.xpose.msra.mxu0 0.0
    %695 = vmatprep.mubr.f32.mxu0 0.0
    %696 = vmatmul.mubr.f32.gmra.mrb[0].mxu0 %v626
    %v697 = vpop.f32.mrb[0].mxu0
    %v698 = vadd.f32 0.0, %v697
    %v699 = vpop.f32.mrb[0].mxu0
    %700 = vdwg.mxu0
    %vm701 = vcmask 57344
    %v702 = vsel %vm701, %v173, -inf
    %703 = vmax.xlane.f32.xlu0 %v702
    %v704 = vpop.xlane.xlu0 %703
    %v705 = vsel %vm701, %v248, -inf
    %706 = vmax.xlane.f32.xlu0 %v705
    %v707 = vpop.xlane.xlu0 %706
    %v708 = vsel %vm701, %v323, -inf
    %709 = vmax.xlane.f32.xlu0 %v708
    %v710 = vpop.xlane.xlu0 %709
    %v711 = vsel %vm701, %v398, -inf
    %712 = vmax.xlane.f32.xlu0 %v711
    %v713 = vpop.xlane.xlu0 %712
    %v714 = vsel %vm701, %v473, -inf
    %715 = vmax.xlane.f32.xlu0 %v714
    %v716 = vpop.xlane.xlu0 %715
    %v717 = vsel %vm701, %v548, -inf
    %718 = vmax.xlane.f32.xlu0 %v717
    %v719 = vpop.xlane.xlu0 %718
    %v720 = vsel %vm701, %v623, -inf
    %721 = vmax.xlane.f32.xlu0 %v720
    %v722 = vpop.xlane.xlu0 %721
    %v723 = vsel %vm701, %v698, -inf
    %724 = vmax.xlane.f32.xlu0 %v723
    %v725 = vpop.xlane.xlu0 %724
    %v726 = vsub.f32 %v173, %v704
    %v727 = vsub.f32 %v248, %v707
    %v728 = vsub.f32 %v323, %v710
    %v729 = vsub.f32 %v398, %v713
    %v730 = vsub.f32 %v473, %v716
    %v731 = vsub.f32 %v548, %v719
    %v732 = vsub.f32 %v623, %v722
    %v733 = vsub.f32 %v698, %v725
    %v734 = vmul.f32 %v726, 1.442695
    %v735 = vpow.pop %v734
    %v736 = vmul.f32 %v727, 1.442695
    %v737 = vpow.pop %v736
    %v738 = vmul.f32 %v728, 1.442695
    %v739 = vpow.pop %v738
    %v740 = vmul.f32 %v729, 1.442695
    %v741 = vpow.pop %v740
    %v742 = vmul.f32 %v730, 1.442695
    %v743 = vpow.pop %v742
    %v744 = vmul.f32 %v731, 1.442695
    %v745 = vpow.pop %v744
    %v746 = vmul.f32 %v732, 1.442695
    %v747 = vpow.pop %v746
    %v748 = vmul.f32 %v733, 1.442695
    %v749 = vpow.pop %v748
    %v750 = vsel %vm701, %v735, 0.0
    %751 = vadd.xlane.f32.xlu0 %v750
    %v752 = vpop.xlane.xlu0 %751
    %v753 = vsel %vm701, %v737, 0.0
    %754 = vadd.xlane.f32.xlu0 %v753
    %v755 = vpop.xlane.xlu0 %754
    %v756 = vsel %vm701, %v739, 0.0
    %757 = vadd.xlane.f32.xlu0 %v756
    %v758 = vpop.xlane.xlu0 %757
    %v759 = vsel %vm701, %v741, 0.0
    %760 = vadd.xlane.f32.xlu0 %v759
    %v761 = vpop.xlane.xlu0 %760
    %v762 = vsel %vm701, %v743, 0.0
    %763 = vadd.xlane.f32.xlu0 %v762
    %v764 = vpop.xlane.xlu0 %763
    %v765 = vsel %vm701, %v745, 0.0
    %766 = vadd.xlane.f32.xlu0 %v765
    %v767 = vpop.xlane.xlu0 %766
    %v768 = vsel %vm701, %v747, 0.0
    %769 = vadd.xlane.f32.xlu0 %v768
    %v770 = vpop.xlane.xlu0 %769
    %v771 = vsel %vm701, %v749, 0.0
    %772 = vadd.xlane.f32.xlu0 %v771
    %v773 = vpop.xlane.xlu0 %772
    %v774 = vrcp.pop %v752
    %v775 = vrcp.pop %v755
    %v776 = vrcp.pop %v758
    %v777 = vrcp.pop %v761
    %v778 = vrcp.pop %v764
    %v779 = vrcp.pop %v767
    %v780 = vrcp.pop %v770
    %v781 = vrcp.pop %v773
    %v782 = vmul.f32 %v735, %v774
    %v783 = vmul.f32 %v737, %v775
    %v784 = vmul.f32 %v739, %v776
    %v785 = vmul.f32 %v741, %v777
    %v786 = vmul.f32 %v743, %v778
    %v787 = vmul.f32 %v745, %v779
    %v788 = vmul.f32 %v747, %v780
    %v789 = vmul.f32 %v749, %v781
    %v798 = vrot.slane %v783, 7
    %vm799 = vcmask 1041409
    %v800 = vsel %vm799, %v798, %v782
    %v801 = vrot.slane %v784, 6
    %vm802 = vcmask 1042434
    %v803 = vsel %vm802, %v801, %v800
    %v804 = vrot.slane %v785, 5
    %vm805 = vcmask 1043459
    %v806 = vsel %vm805, %v804, %v803
    %v807 = vrot.slane %v786, 4
    %vm808 = vcmask 1044484
    %v809 = vsel %vm808, %v807, %v806
    %v810 = vrot.slane %v787, 3
    %vm811 = vcmask 1045509
    %v812 = vsel %vm811, %v810, %v809
    %v813 = vrot.slane %v788, 2
    %vm814 = vcmask 1046534
    %v815 = vsel %vm814, %v813, %v812
    %v816 = vrot.slane %v789, 1
    %vm817 = vcmask 1047559
    %v818 = vsel %vm817, %v816, %v815
    %vm820 = vcmask 64512
    %821 = vst.msk [vmem:[#allocation8] sm:$0xff] %vm820, %v818
    %v822 = vsel %vm820, %v782, 0
    %824 = vmatprep.subr.mxu0 0.0
    %825 = vmatpush1.msra.mxu0 %v92
    %826 = vmatprep.subr.mxu0 0.0
    %827 = vmatpush1.msra.mxu0 0.0
    %828 = vmatprep.subr.mxu0 0.0
    %829 = vmatpush1.msra.mxu0 0.0
    %830 = vmatprep.subr.mxu0 0.0
    %831 = vmatpush1.msra.mxu0 0.0
    %832 = vmatprep.subr.mxu0 0.0
    %833 = vmatpush1.msra.mxu0 0.0
    %834 = vmatprep.subr.mxu0 0.0
    %835 = vmatpush1.msra.mxu0 0.0
    %836 = vmatprep.subr.mxu0 0.0
    %837 = vmatpush1.msra.mxu0 0.0
    %838 = vmatprep.subr.mxu0 0.0
    %839 = vmatpush1.msra.mxu0 0.0
    %840 = vmatprep.subr.mxu0 0.0
    %841 = vmatpush1.msra.mxu0 0.0
    %842 = vmatprep.subr.mxu0 0.0
    %843 = vmatpush1.msra.mxu0 0.0
    %844 = vmatprep.subr.mxu0 0.0
    %845 = vmatpush1.msra.mxu0 0.0
    %846 = vmatprep.subr.mxu0 0.0
    %847 = vmatpush1.msra.mxu0 0.0
    %848 = vmatprep.subr.mxu0 0.0
    %849 = vmatpush1.msra.mxu0 0.0
    %850 = vmatprep.subr.mxu0 0.0
    %851 = vmatpush1.msra.mxu0 0.0
    %852 = vmatprep.subr.mxu0 0.0
    %853 = vmatpush1.msra.mxu0 0.0
    %854 = vmatprep.subr.mxu0 0.0
    %855 = vmatpush1.msra.mxu0 0.0
    %856 = vmatprep.subr.mxu0 0.0
    %857 = vmatpush1.msra.mxu0 0.0
    %858 = vmatprep.subr.mxu0 0.0
    %859 = vmatpush1.msra.mxu0 0.0
    %860 = vmatprep.subr.mxu0 0.0
    %861 = vmatpush1.msra.mxu0 0.0
    %862 = vmatprep.subr.mxu0 0.0
    %863 = vmatpush1.msra.mxu0 0.0
    %864 = vmatprep.subr.mxu0 0.0
    %865 = vmatpush1.msra.mxu0 0.0
    %866 = vmatprep.subr.mxu0 0.0
    %867 = vmatpush1.msra.mxu0 0.0
    %868 = vmatprep.subr.mxu0 0.0
    %869 = vmatpush1.msra.mxu0 0.0
    %870 = vmatprep.subr.mxu0 0.0
    %871 = vmatpush1.msra.mxu0 0.0
    %872 = vmatprep.subr.mxu0 0.0
    %873 = vmatpush1.msra.mxu0 0.0
    %874 = vmatprep.subr.mxu0 0.0
    %875 = vmatpush1.msra.mxu0 0.0
    %876 = vmatprep.subr.mxu0 0.0
    %877 = vmatpush1.msra.mxu0 0.0
    %878 = vmatprep.subr.mxu0 0.0
    %879 = vmatpush1.msra.mxu0 0.0
    %880 = vmatprep.subr.mxu0 0.0
    %881 = vmatpush1.msra.mxu0 0.0
    %882 = vmatprep.subr.mxu0 0.0
    %883 = vmatpush1.msra.mxu0 0.0
    %884 = vmatprep.subr.mxu0 0.0
    %885 = vmatpush1.msra.mxu0 0.0
    %886 = vmatprep.subr.mxu0 0.0
    %887 = vmatpush1.msra.mxu0 0.0
    %888 = vmatprep.mubr.f32.mxu0 0.0
    %889 = vmatmul.mubr.f32.gmra.mrb[0].mxu0 %v822
    %v890 = vpop.f32.mrb[0].mxu0
    %v891 = vadd.f32 0.0, %v890
    %v892 = vpop.f32.mrb[0].mxu0
    %893 = vdwg.mxu0
    %v894 = vsel %vm820, %v783, 0
    %896 = vmatprep.subr.mxu0 0.0
    %897 = vmatpush1.msra.mxu0 %v93
    %898 = vmatprep.subr.mxu0 0.0
    %899 = vmatpush1.msra.mxu0 0.0
    %900 = vmatprep.subr.mxu0 0.0
    %901 = vmatpush1.msra.mxu0 0.0
    %902 = vmatprep.subr.mxu0 0.0
    %903 = vmatpush1.msra.mxu0 0.0
    %904 = vmatprep.subr.mxu0 0.0
    %905 = vmatpush1.msra.mxu0 0.0
    %906 = vmatprep.subr.mxu0 0.0
    %907 = vmatpush1.msra.mxu0 0.0
    %908 = vmatprep.subr.mxu0 0.0
    %909 = vmatpush1.msra.mxu0 0.0
    %910 = vmatprep.subr.mxu0 0.0
    %911 = vmatpush1.msra.mxu0 0.0
    %912 = vmatprep.subr.mxu0 0.0
    %913 = vmatpush1.msra.mxu0 0.0
    %914 = vmatprep.subr.mxu0 0.0
    %915 = vmatpush1.msra.mxu0 0.0
    %916 = vmatprep.subr.mxu0 0.0
    %917 = vmatpush1.msra.mxu0 0.0
    %918 = vmatprep.subr.mxu0 0.0
    %919 = vmatpush1.msra.mxu0 0.0
    %920 = vmatprep.subr.mxu0 0.0
    %921 = vmatpush1.msra.mxu0 0.0
    %922 = vmatprep.subr.mxu0 0.0
    %923 = vmatpush1.msra.mxu0 0.0
    %924 = vmatprep.subr.mxu0 0.0
    %925 = vmatpush1.msra.mxu0 0.0
    %926 = vmatprep.subr.mxu0 0.0
    %927 = vmatpush1.msra.mxu0 0.0
    %928 = vmatprep.subr.mxu0 0.0
    %929 = vmatpush1.msra.mxu0 0.0
    %930 = vmatprep.subr.mxu0 0.0
    %931 = vmatpush1.msra.mxu0 0.0
    %932 = vmatprep.subr.mxu0 0.0
    %933 = vmatpush1.msra.mxu0 0.0
    %934 = vmatprep.subr.mxu0 0.0
    %935 = vmatpush1.msra.mxu0 0.0
    %936 = vmatprep.subr.mxu0 0.0
    %937 = vmatpush1.msra.mxu0 0.0
    %938 = vmatprep.subr.mxu0 0.0
    %939 = vmatpush1.msra.mxu0 0.0
    %940 = vmatprep.subr.mxu0 0.0
    %941 = vmatpush1.msra.mxu0 0.0
    %942 = vmatprep.subr.mxu0 0.0
    %943 = vmatpush1.msra.mxu0 0.0
    %944 = vmatprep.subr.mxu0 0.0
    %945 = vmatpush1.msra.mxu0 0.0
    %946 = vmatprep.subr.mxu0 0.0
    %947 = vmatpush1.msra.mxu0 0.0
    %948 = vmatprep.subr.mxu0 0.0
    %949 = vmatpush1.msra.mxu0 0.0
    %950 = vmatprep.subr.mxu0 0.0
    %951 = vmatpush1.msra.mxu0 0.0
    %952 = vmatprep.subr.mxu0 0.0
    %953 = vmatpush1.msra.mxu0 0.0
    %954 = vmatprep.subr.mxu0 0.0
    %955 = vmatpush1.msra.mxu0 0.0
    %956 = vmatprep.subr.mxu0 0.0
    %957 = vmatpush1.msra.mxu0 0.0
    %958 = vmatprep.subr.mxu0 0.0
    %959 = vmatpush1.msra.mxu0 0.0
    %960 = vmatprep.mubr.f32.mxu0 0.0
    %961 = vmatmul.mubr.f32.gmra.mrb[0].mxu0 %v894
    %v962 = vpop.f32.mrb[0].mxu0
    %v963 = vadd.f32 0.0, %v962
    %v964 = vpop.f32.mrb[0].mxu0
    %965 = vdwg.mxu0
    %v966 = vsel %vm820, %v784, 0
    %968 = vmatprep.subr.mxu0 0.0
    %969 = vmatpush1.msra.mxu0 %v94
    %970 = vmatprep.subr.mxu0 0.0
    %971 = vmatpush1.msra.mxu0 0.0
    %972 = vmatprep.subr.mxu0 0.0
    %973 = vmatpush1.msra.mxu0 0.0
    %974 = vmatprep.subr.mxu0 0.0
    %975 = vmatpush1.msra.mxu0 0.0
    %976 = vmatprep.subr.mxu0 0.0
    %977 = vmatpush1.msra.mxu0 0.0
    %978 = vmatprep.subr.mxu0 0.0
    %979 = vmatpush1.msra.mxu0 0.0
    %980 = vmatprep.subr.mxu0 0.0
    %981 = vmatpush1.msra.mxu0 0.0
    %982 = vmatprep.subr.mxu0 0.0
    %983 = vmatpush1.msra.mxu0 0.0
    %984 = vmatprep.subr.mxu0 0.0
    %985 = vmatpush1.msra.mxu0 0.0
    %986 = vmatprep.subr.mxu0 0.0
    %987 = vmatpush1.msra.mxu0 0.0
    %988 = vmatprep.subr.mxu0 0.0
    %989 = vmatpush1.msra.mxu0 0.0
    %990 = vmatprep.subr.mxu0 0.0
    %991 = vmatpush1.msra.mxu0 0.0
    %992 = vmatprep.subr.mxu0 0.0
    %993 = vmatpush1.msra.mxu0 0.0
    %994 = vmatprep.subr.mxu0 0.0
    %995 = vmatpush1.msra.mxu0 0.0
    %996 = vmatprep.subr.mxu0 0.0
    %997 = vmatpush1.msra.mxu0 0.0
    %998 = vmatprep.subr.mxu0 0.0
    %999 = vmatpush1.msra.mxu0 0.0
    %1000 = vmatprep.subr.mxu0 0.0
    %1001 = vmatpush1.msra.mxu0 0.0
    %1002 = vmatprep.subr.mxu0 0.0
    %1003 = vmatpush1.msra.mxu0 0.0
    %1004 = vmatprep.subr.mxu0 0.0
    %1005 = vmatpush1.msra.mxu0 0.0
    %1006 = vmatprep.subr.mxu0 0.0
    %1007 = vmatpush1.msra.mxu0 0.0
    %1008 = vmatprep.subr.mxu0 0.0
    %1009 = vmatpush1.msra.mxu0 0.0
    %1010 = vmatprep.subr.mxu0 0.0
    %1011 = vmatpush1.msra.mxu0 0.0
    %1012 = vmatprep.subr.mxu0 0.0
    %1013 = vmatpush1.msra.mxu0 0.0
    %1014 = vmatprep.subr.mxu0 0.0
    %1015 = vmatpush1.msra.mxu0 0.0
    %1016 = vmatprep.subr.mxu0 0.0
    %1017 = vmatpush1.msra.mxu0 0.0
    %1018 = vmatprep.subr.mxu0 0.0
    %1019 = vmatpush1.msra.mxu0 0.0
    %1020 = vmatprep.subr.mxu0 0.0
    %1021 = vmatpush1.msra.mxu0 0.0
    %1022 = vmatprep.subr.mxu0 0.0
    %1023 = vmatpush1.msra.mxu0 0.0
    %1024 = vmatprep.subr.mxu0 0.0
    %1025 = vmatpush1.msra.mxu0 0.0
    %1026 = vmatprep.subr.mxu0 0.0
    %1027 = vmatpush1.msra.mxu0 0.0
    %1028 = vmatprep.subr.mxu0 0.0
    %1029 = vmatpush1.msra.mxu0 0.0
    %1030 = vmatprep.subr.mxu0 0.0
    %1031 = vmatpush1.msra.mxu0 0.0
    %1032 = vmatprep.mubr.f32.mxu0 0.0
    %1033 = vmatmul.mubr.f32.gmra.mrb[0].mxu0 %v966
    %v1034 = vpop.f32.mrb[0].mxu0
    %v1035 = vadd.f32 0.0, %v1034
    %v1036 = vpop.f32.mrb[0].mxu0
    %1037 = vdwg.mxu0
    %v1038 = vsel %vm820, %v785, 0
    %1040 = vmatprep.subr.mxu0 0.0
    %1041 = vmatpush1.msra.mxu0 %v95
    %1042 = vmatprep.subr.mxu0 0.0
    %1043 = vmatpush1.msra.mxu0 0.0
    %1044 = vmatprep.subr.mxu0 0.0
    %1045 = vmatpush1.msra.mxu0 0.0
    %1046 = vmatprep.subr.mxu0 0.0
    %1047 = vmatpush1.msra.mxu0 0.0
    %1048 = vmatprep.subr.mxu0 0.0
    %1049 = vmatpush1.msra.mxu0 0.0
    %1050 = vmatprep.subr.mxu0 0.0
    %1051 = vmatpush1.msra.mxu0 0.0
    %1052 = vmatprep.subr.mxu0 0.0
    %1053 = vmatpush1.msra.mxu0 0.0
    %1054 = vmatprep.subr.mxu0 0.0
    %1055 = vmatpush1.msra.mxu0 0.0
    %1056 = vmatprep.subr.mxu0 0.0
    %1057 = vmatpush1.msra.mxu0 0.0
    %1058 = vmatprep.subr.mxu0 0.0
    %1059 = vmatpush1.msra.mxu0 0.0
    %1060 = vmatprep.subr.mxu0 0.0
    %1061 = vmatpush1.msra.mxu0 0.0
    %1062 = vmatprep.subr.mxu0 0.0
    %1063 = vmatpush1.msra.mxu0 0.0
    %1064 = vmatprep.subr.mxu0 0.0
    %1065 = vmatpush1.msra.mxu0 0.0
    %1066 = vmatprep.subr.mxu0 0.0
    %1067 = vmatpush1.msra.mxu0 0.0
    %1068 = vmatprep.subr.mxu0 0.0
    %1069 = vmatpush1.msra.mxu0 0.0
    %1070 = vmatprep.subr.mxu0 0.0
    %1071 = vmatpush1.msra.mxu0 0.0
    %1072 = vmatprep.subr.mxu0 0.0
    %1073 = vmatpush1.msra.mxu0 0.0
    %1074 = vmatprep.subr.mxu0 0.0
    %1075 = vmatpush1.msra.mxu0 0.0
    %1076 = vmatprep.subr.mxu0 0.0
    %1077 = vmatpush1.msra.mxu0 0.0
    %1078 = vmatprep.subr.mxu0 0.0
    %1079 = vmatpush1.msra.mxu0 0.0
    %1080 = vmatprep.subr.mxu0 0.0
    %1081 = vmatpush1.msra.mxu0 0.0
    %1082 = vmatprep.subr.mxu0 0.0
    %1083 = vmatpush1.msra.mxu0 0.0
    %1084 = vmatprep.subr.mxu0 0.0
    %1085 = vmatpush1.msra.mxu0 0.0
    %1086 = vmatprep.subr.mxu0 0.0
    %1087 = vmatpush1.msra.mxu0 0.0
    %1088 = vmatprep.subr.mxu0 0.0
    %1089 = vmatpush1.msra.mxu0 0.0
    %1090 = vmatprep.subr.mxu0 0.0
    %1091 = vmatpush1.msra.mxu0 0.0
    %1092 = vmatprep.subr.mxu0 0.0
    %1093 = vmatpush1.msra.mxu0 0.0
    %1094 = vmatprep.subr.mxu0 0.0
    %1095 = vmatpush1.msra.mxu0 0.0
    %1096 = vmatprep.subr.mxu0 0.0
    %1097 = vmatpush1.msra.mxu0 0.0
    %1098 = vmatprep.subr.mxu0 0.0
    %1099 = vmatpush1.msra.mxu0 0.0
    %1100 = vmatprep.subr.mxu0 0.0
    %1101 = vmatpush1.msra.mxu0 0.0
    %1102 = vmatprep.subr.mxu0 0.0
    %1103 = vmatpush1.msra.mxu0 0.0
    %1104 = vmatprep.mubr.f32.mxu0 0.0
    %1105 = vmatmul.mubr.f32.gmra.mrb[0].mxu0 %v1038
    %v1106 = vpop.f32.mrb[0].mxu0
    %v1107 = vadd.f32 0.0, %v1106
    %v1108 = vpop.f32.mrb[0].mxu0
    %1109 = vdwg.mxu0
    %v1110 = vsel %vm820, %v786, 0
    %1112 = vmatprep.subr.mxu0 0.0
    %1113 = vmatpush1.msra.mxu0 %v96
    %1114 = vmatprep.subr.mxu0 0.0
    %1115 = vmatpush1.msra.mxu0 0.0
    %1116 = vmatprep.subr.mxu0 0.0
    %1117 = vmatpush1.msra.mxu0 0.0
    %1118 = vmatprep.subr.mxu0 0.0
    %1119 = vmatpush1.msra.mxu0 0.0
    %1120 = vmatprep.subr.mxu0 0.0
    %1121 = vmatpush1.msra.mxu0 0.0
    %1122 = vmatprep.subr.mxu0 0.0
    %1123 = vmatpush1.msra.mxu0 0.0
    %1124 = vmatprep.subr.mxu0 0.0
    %1125 = vmatpush1.msra.mxu0 0.0
    %1126 = vmatprep.subr.mxu0 0.0
    %1127 = vmatpush1.msra.mxu0 0.0
    %1128 = vmatprep.subr.mxu0 0.0
    %1129 = vmatpush1.msra.mxu0 0.0
    %1130 = vmatprep.subr.mxu0 0.0
    %1131 = vmatpush1.msra.mxu0 0.0
    %1132 = vmatprep.subr.mxu0 0.0
    %1133 = vmatpush1.msra.mxu0 0.0
    %1134 = vmatprep.subr.mxu0 0.0
    %1135 = vmatpush1.msra.mxu0 0.0
    %1136 = vmatprep.subr.mxu0 0.0
    %1137 = vmatpush1.msra.mxu0 0.0
    %1138 = vmatprep.subr.mxu0 0.0
    %1139 = vmatpush1.msra.mxu0 0.0
    %1140 = vmatprep.subr.mxu0 0.0
    %1141 = vmatpush1.msra.mxu0 0.0
    %1142 = vmatprep.subr.mxu0 0.0
    %1143 = vmatpush1.msra.mxu0 0.0
    %1144 = vmatprep.subr.mxu0 0.0
    %1145 = vmatpush1.msra.mxu0 0.0
    %1146 = vmatprep.subr.mxu0 0.0
    %1147 = vmatpush1.msra.mxu0 0.0
    %1148 = vmatprep.subr.mxu0 0.0
    %1149 = vmatpush1.msra.mxu0 0.0
    %1150 = vmatprep.subr.mxu0 0.0
    %1151 = vmatpush1.msra.mxu0 0.0
    %1152 = vmatprep.subr.mxu0 0.0
    %1153 = vmatpush1.msra.mxu0 0.0
    %1154 = vmatprep.subr.mxu0 0.0
    %1155 = vmatpush1.msra.mxu0 0.0
    %1156 = vmatprep.subr.mxu0 0.0
    %1157 = vmatpush1.msra.mxu0 0.0
    %1158 = vmatprep.subr.mxu0 0.0
    %1159 = vmatpush1.msra.mxu0 0.0
    %1160 = vmatprep.subr.mxu0 0.0
    %1161 = vmatpush1.msra.mxu0 0.0
    %1162 = vmatprep.subr.mxu0 0.0
    %1163 = vmatpush1.msra.mxu0 0.0
    %1164 = vmatprep.subr.mxu0 0.0
    %1165 = vmatpush1.msra.mxu0 0.0
    %1166 = vmatprep.subr.mxu0 0.0
    %1167 = vmatpush1.msra.mxu0 0.0
    %1168 = vmatprep.subr.mxu0 0.0
    %1169 = vmatpush1.msra.mxu0 0.0
    %1170 = vmatprep.subr.mxu0 0.0
    %1171 = vmatpush1.msra.mxu0 0.0
    %1172 = vmatprep.subr.mxu0 0.0
    %1173 = vmatpush1.msra.mxu0 0.0
    %1174 = vmatprep.subr.mxu0 0.0
    %1175 = vmatpush1.msra.mxu0 0.0
    %1176 = vmatprep.mubr.f32.mxu0 0.0
    %1177 = vmatmul.mubr.f32.gmra.mrb[0].mxu0 %v1110
    %v1178 = vpop.f32.mrb[0].mxu0
    %v1179 = vadd.f32 0.0, %v1178
    %v1180 = vpop.f32.mrb[0].mxu0
    %1181 = vdwg.mxu0
    %v1182 = vsel %vm820, %v787, 0
    %1184 = vmatprep.subr.mxu0 0.0
    %1185 = vmatpush1.msra.mxu0 %v97
    %1186 = vmatprep.subr.mxu0 0.0
    %1187 = vmatpush1.msra.mxu0 0.0
    %1188 = vmatprep.subr.mxu0 0.0
    %1189 = vmatpush1.msra.mxu0 0.0
    %1190 = vmatprep.subr.mxu0 0.0
    %1191 = vmatpush1.msra.mxu0 0.0
    %1192 = vmatprep.subr.mxu0 0.0
    %1193 = vmatpush1.msra.mxu0 0.0
    %1194 = vmatprep.subr.mxu0 0.0
    %1195 = vmatpush1.msra.mxu0 0.0
    %1196 = vmatprep.subr.mxu0 0.0
    %1197 = vmatpush1.msra.mxu0 0.0
    %1198 = vmatprep.subr.mxu0 0.0
    %1199 = vmatpush1.msra.mxu0 0.0
    %1200 = vmatprep.subr.mxu0 0.0
    %1201 = vmatpush1.msra.mxu0 0.0
    %1202 = vmatprep.subr.mxu0 0.0
    %1203 = vmatpush1.msra.mxu0 0.0
    %1204 = vmatprep.subr.mxu0 0.0
    %1205 = vmatpush1.msra.mxu0 0.0
    %1206 = vmatprep.subr.mxu0 0.0
    %1207 = vmatpush1.msra.mxu0 0.0
    %1208 = vmatprep.subr.mxu0 0.0
    %1209 = vmatpush1.msra.mxu0 0.0
    %1210 = vmatprep.subr.mxu0 0.0
    %1211 = vmatpush1.msra.mxu0 0.0
    %1212 = vmatprep.subr.mxu0 0.0
    %1213 = vmatpush1.msra.mxu0 0.0
    %1214 = vmatprep.subr.mxu0 0.0
    %1215 = vmatpush1.msra.mxu0 0.0
    %1216 = vmatprep.subr.mxu0 0.0
    %1217 = vmatpush1.msra.mxu0 0.0
    %1218 = vmatprep.subr.mxu0 0.0
    %1219 = vmatpush1.msra.mxu0 0.0
    %1220 = vmatprep.subr.mxu0 0.0
    %1221 = vmatpush1.msra.mxu0 0.0
    %1222 = vmatprep.subr.mxu0 0.0
    %1223 = vmatpush1.msra.mxu0 0.0
    %1224 = vmatprep.subr.mxu0 0.0
    %1225 = vmatpush1.msra.mxu0 0.0
    %1226 = vmatprep.subr.mxu0 0.0
    %1227 = vmatpush1.msra.mxu0 0.0
    %1228 = vmatprep.subr.mxu0 0.0
    %1229 = vmatpush1.msra.mxu0 0.0
    %1230 = vmatprep.subr.mxu0 0.0
    %1231 = vmatpush1.msra.mxu0 0.0
    %1232 = vmatprep.subr.mxu0 0.0
    %1233 = vmatpush1.msra.mxu0 0.0
    %1234 = vmatprep.subr.mxu0 0.0
    %1235 = vmatpush1.msra.mxu0 0.0
    %1236 = vmatprep.subr.mxu0 0.0
    %1237 = vmatpush1.msra.mxu0 0.0
    %1238 = vmatprep.subr.mxu0 0.0
    %1239 = vmatpush1.msra.mxu0 0.0
    %1240 = vmatprep.subr.mxu0 0.0
    %1241 = vmatpush1.msra.mxu0 0.0
    %1242 = vmatprep.subr.mxu0 0.0
    %1243 = vmatpush1.msra.mxu0 0.0
    %1244 = vmatprep.subr.mxu0 0.0
    %1245 = vmatpush1.msra.mxu0 0.0
    %1246 = vmatprep.subr.mxu0 0.0
    %1247 = vmatpush1.msra.mxu0 0.0
    %1248 = vmatprep.mubr.f32.mxu0 0.0
    %1249 = vmatmul.mubr.f32.gmra.mrb[0].mxu0 %v1182
    %v1250 = vpop.f32.mrb[0].mxu0
    %v1251 = vadd.f32 0.0, %v1250
    %v1252 = vpop.f32.mrb[0].mxu0
    %1253 = vdwg.mxu0
    %v1254 = vsel %vm820, %v788, 0
    %1256 = vmatprep.subr.mxu0 0.0
    %1257 = vmatpush1.msra.mxu0 %v98
    %1258 = vmatprep.subr.mxu0 0.0
    %1259 = vmatpush1.msra.mxu0 0.0
    %1260 = vmatprep.subr.mxu0 0.0
    %1261 = vmatpush1.msra.mxu0 0.0
    %1262 = vmatprep.subr.mxu0 0.0
    %1263 = vmatpush1.msra.mxu0 0.0
    %1264 = vmatprep.subr.mxu0 0.0
    %1265 = vmatpush1.msra.mxu0 0.0
    %1266 = vmatprep.subr.mxu0 0.0
    %1267 = vmatpush1.msra.mxu0 0.0
    %1268 = vmatprep.subr.mxu0 0.0
    %1269 = vmatpush1.msra.mxu0 0.0
    %1270 = vmatprep.subr.mxu0 0.0
    %1271 = vmatpush1.msra.mxu0 0.0
    %1272 = vmatprep.subr.mxu0 0.0
    %1273 = vmatpush1.msra.mxu0 0.0
    %1274 = vmatprep.subr.mxu0 0.0
    %1275 = vmatpush1.msra.mxu0 0.0
    %1276 = vmatprep.subr.mxu0 0.0
    %1277 = vmatpush1.msra.mxu0 0.0
    %1278 = vmatprep.subr.mxu0 0.0
    %1279 = vmatpush1.msra.mxu0 0.0
    %1280 = vmatprep.subr.mxu0 0.0
    %1281 = vmatpush1.msra.mxu0 0.0
    %1282 = vmatprep.subr.mxu0 0.0
    %1283 = vmatpush1.msra.mxu0 0.0
    %1284 = vmatprep.subr.mxu0 0.0
    %1285 = vmatpush1.msra.mxu0 0.0
    %1286 = vmatprep.subr.mxu0 0.0
    %1287 = vmatpush1.msra.mxu0 0.0
    %1288 = vmatprep.subr.mxu0 0.0
    %1289 = vmatpush1.msra.mxu0 0.0
    %1290 = vmatprep.subr.mxu0 0.0
    %1291 = vmatpush1.msra.mxu0 0.0
    %1292 = vmatprep.subr.mxu0 0.0
    %1293 = vmatpush1.msra.mxu0 0.0
    %1294 = vmatprep.subr.mxu0 0.0
    %1295 = vmatpush1.msra.mxu0 0.0
    %1296 = vmatprep.subr.mxu0 0.0
    %1297 = vmatpush1.msra.mxu0 0.0
    %1298 = vmatprep.subr.mxu0 0.0
    %1299 = vmatpush1.msra.mxu0 0.0
    %1300 = vmatprep.subr.mxu0 0.0
    %1301 = vmatpush1.msra.mxu0 0.0
    %1302 = vmatprep.subr.mxu0 0.0
    %1303 = vmatpush1.msra.mxu0 0.0
    %1304 = vmatprep.subr.mxu0 0.0
    %1305 = vmatpush1.msra.mxu0 0.0
    %1306 = vmatprep.subr.mxu0 0.0
    %1307 = vmatpush1.msra.mxu0 0.0
    %1308 = vmatprep.subr.mxu0 0.0
    %1309 = vmatpush1.msra.mxu0 0.0
    %1310 = vmatprep.subr.mxu0 0.0
    %1311 = vmatpush1.msra.mxu0 0.0
    %1312 = vmatprep.subr.mxu0 0.0
    %1313 = vmatpush1.msra.mxu0 0.0
    %1314 = vmatprep.subr.mxu0 0.0
    %1315 = vmatpush1.msra.mxu0 0.0
    %1316 = vmatprep.subr.mxu0 0.0
    %1317 = vmatpush1.msra.mxu0 0.0
    %1318 = vmatprep.subr.mxu0 0.0
    %1319 = vmatpush1.msra.mxu0 0.0
    %1320 = vmatprep.mubr.f32.mxu0 0.0
    %1321 = vmatmul.mubr.f32.gmra.mrb[0].mxu0 %v1254
    %v1322 = vpop.f32.mrb[0].mxu0
    %v1323 = vadd.f32 0.0, %v1322
    %v1324 = vpop.f32.mrb[0].mxu0
    %1325 = vdwg.mxu0
    %v1326 = vsel %vm820, %v789, 0
    %1328 = vmatprep.subr.mxu0 0.0
    %1329 = vmatpush1.msra.mxu0 %v99
    %1330 = vmatprep.subr.mxu0 0.0
    %1331 = vmatpush1.msra.mxu0 0.0
    %1332 = vmatprep.subr.mxu0 0.0
    %1333 = vmatpush1.msra.mxu0 0.0
    %1334 = vmatprep.subr.mxu0 0.0
    %1335 = vmatpush1.msra.mxu0 0.0
    %1336 = vmatprep.subr.mxu0 0.0
    %1337 = vmatpush1.msra.mxu0 0.0
    %1338 = vmatprep.subr.mxu0 0.0
    %1339 = vmatpush1.msra.mxu0 0.0
    %1340 = vmatprep.subr.mxu0 0.0
    %1341 = vmatpush1.msra.mxu0 0.0
    %1342 = vmatprep.subr.mxu0 0.0
    %1343 = vmatpush1.msra.mxu0 0.0
    %1344 = vmatprep.subr.mxu0 0.0
    %1345 = vmatpush1.msra.mxu0 0.0
    %1346 = vmatprep.subr.mxu0 0.0
    %1347 = vmatpush1.msra.mxu0 0.0
    %1348 = vmatprep.subr.mxu0 0.0
    %1349 = vmatpush1.msra.mxu0 0.0
    %1350 = vmatprep.subr.mxu0 0.0
    %1351 = vmatpush1.msra.mxu0 0.0
    %1352 = vmatprep.subr.mxu0 0.0
    %1353 = vmatpush1.msra.mxu0 0.0
    %1354 = vmatprep.subr.mxu0 0.0
    %1355 = vmatpush1.msra.mxu0 0.0
    %1356 = vmatprep.subr.mxu0 0.0
    %1357 = vmatpush1.msra.mxu0 0.0
    %1358 = vmatprep.subr.mxu0 0.0
    %1359 = vmatpush1.msra.mxu0 0.0
    %1360 = vmatprep.subr.mxu0 0.0
    %1361 = vmatpush1.msra.mxu0 0.0
    %1362 = vmatprep.subr.mxu0 0.0
    %1363 = vmatpush1.msra.mxu0 0.0
    %1364 = vmatprep.subr.mxu0 0.0
    %1365 = vmatpush1.msra.mxu0 0.0
    %1366 = vmatprep.subr.mxu0 0.0
    %1367 = vmatpush1.msra.mxu0 0.0
    %1368 = vmatprep.subr.mxu0 0.0
    %1369 = vmatpush1.msra.mxu0 0.0
    %1370 = vmatprep.subr.mxu0 0.0
    %1371 = vmatpush1.msra.mxu0 0.0
    %1372 = vmatprep.subr.mxu0 0.0
    %1373 = vmatpush1.msra.mxu0 0.0
    %1374 = vmatprep.subr.mxu0 0.0
    %1375 = vmatpush1.msra.mxu0 0.0
    %1376 = vmatprep.subr.mxu0 0.0
    %1377 = vmatpush1.msra.mxu0 0.0
    %1378 = vmatprep.subr.mxu0 0.0
    %1379 = vmatpush1.msra.mxu0 0.0
    %1380 = vmatprep.subr.mxu0 0.0
    %1381 = vmatpush1.msra.mxu0 0.0
    %1382 = vmatprep.subr.mxu0 0.0
    %1383 = vmatpush1.msra.mxu0 0.0
    %1384 = vmatprep.subr.mxu0 0.0
    %1385 = vmatpush1.msra.mxu0 0.0
    %1386 = vmatprep.subr.mxu0 0.0
    %1387 = vmatpush1.msra.mxu0 0.0
    %1388 = vmatprep.subr.mxu0 0.0
    %1389 = vmatpush1.msra.mxu0 0.0
    %1390 = vmatprep.subr.mxu0 0.0
    %1391 = vmatpush1.msra.mxu0 0.0
    %1392 = vmatprep.mubr.f32.mxu0 0.0
    %1393 = vmatmul.mubr.f32.gmra.mrb[0].mxu0 %v1326
    %v1394 = vpop.f32.mrb[0].mxu0
    %v1395 = vadd.f32 0.0, %v1394
    %v1396 = vpop.f32.mrb[0].mxu0
    %1397 = vdwg.mxu0
    %v1406 = vrot.slane %v963, 7
    %v1407 = vsel %vm799, %v1406, %v891
    %v1408 = vrot.slane %v1035, 6
    %v1409 = vsel %vm802, %v1408, %v1407
    %v1410 = vrot.slane %v1107, 5
    %v1411 = vsel %vm805, %v1410, %v1409
    %v1412 = vrot.slane %v1179, 4
    %v1413 = vsel %vm808, %v1412, %v1411
    %v1414 = vrot.slane %v1251, 3
    %v1415 = vsel %vm811, %v1414, %v1413
    %v1416 = vrot.slane %v1323, 2
    %v1417 = vsel %vm814, %v1416, %v1415
    %v1418 = vrot.slane %v1395, 1
    %v1419 = vsel %vm817, %v1418, %v1417
    %1421 = vst.msk [vmem:[#allocation7] sm:$0xff] %vm100, %v1419
    // Predicated region
    $region18: #{tpu_custom_call.1} parent=1 // pred_check
      _
    $region19: #{tpu_custom_call.1} parent=1 // pred_check_branch
      %1423 = sbr.rel (0) target = $region21
    $region20: #{tpu_custom_call.1} parent=1 // pred_region
      %s1425 = ssub.s32 128, 128
      %1426 = vsyncadd [#allocation4], %s1425
      %s1428 = sshll.u32 [#allocation7], 4
      %s1429 = int_to_ptr.vmem [resolvable:$true] %s1428
      %1431 = dma.vmem_to_hbm [thread:$0]  %s1429, 128, %s2, [#allocation4]
    $region21: #{tpu_custom_call.1} parent=1 // pred_fallthru
      _
    // Predicated region
    $region22: #{tpu_custom_call.1} parent=1 // pred_check
      _
    $region23: #{tpu_custom_call.1} parent=1 // pred_check_branch
      %1433 = sbr.rel (0) target = $region25
    $region24: #{tpu_custom_call.1} parent=1 // pred_region
      %s1435 = ssub.s32 128, 128
      %1436 = vsyncadd [#allocation9], %s1435
      %s1438 = sshll.u32 [#allocation8], 4
      %s1439 = int_to_ptr.vmem [resolvable:$true] %s1438
      %1441 = dma.vmem_to_hbm [thread:$0]  %s1439, 128, %s3, [#allocation9]
    $region25: #{tpu_custom_call.1} parent=1 // pred_fallthru
      _
    // Predicated region
    $region26: #{tpu_custom_call.1} parent=1 // pred_check
      _
    $region27: #{tpu_custom_call.1} parent=1 // pred_check_branch
      %1443 = sbr.rel (0) target = $region29
    $region28: #{tpu_custom_call.1} parent=1 // pred_region
      %1444 = dma.done [#allocation4], 128
    $region29: #{tpu_custom_call.1} parent=1 // pred_fallthru
      _
    // Predicated region
    $region30: #{tpu_custom_call.1} parent=1 // pred_check
      _
    $region31: #{tpu_custom_call.1} parent=1 // pred_check_branch
      %1446 = sbr.rel (0) target = $region33
    $region32: #{tpu_custom_call.1} parent=1 // pred_region
      %1447 = dma.done [#allocation9], 128
    $region33: #{tpu_custom_call.1} parent=1 // pred_fallthru
      _
    %1448 = vsyncpa [#allocation3], 1
    %1449 = vsyncpa [#allocation6], 1
    %1450 = vsyncpa [#allocation4], 1
    %1451 = vsyncpa [#allocation9], 1

</llo_original>
